<compile_context>
chip_gen: v7x
topology: tpu7x:2x2x1
jax: 0.10.0
libtpu: 0.0.40
codegen_flags: <defaults>
</compile_context>

<pallas_src>
import functools

import jax
import jax.numpy as jnp
from jax.experimental import pallas as pl
from jax.experimental.pallas import tpu as pltpu

_VMEM_LIMIT = 48 * 1024 * 1024   # safe on v5e/v6e (128 MiB) and v7x (64 MiB physical)
_NODE_TILE = 256                 # small node tile: one-hot MXU waste stays below HBM roofline
_EDGE_TILE = 2048                # large edge tile: per-step DMA >> per-step overhead


def _round_up(x, m):
    return ((x + m - 1) // m) * m


def _tile_and_pad(dim, target):
    """Full-extent block if dim fits in one target block (always legal),
    otherwise the aligned target with the dim padded up."""
    if dim <= target:
        return dim, dim
    return target, _round_up(dim, target)


# ----------------------------- tiled matmul -----------------------------------

def _matmul_kernel(a_ref, b_ref, o_ref, acc_ref):
    @pl.when(pl.program_id(2) == 0)
    def _():
        acc_ref[...] = jnp.zeros_like(acc_ref)

    acc_ref[...] += jnp.dot(a_ref[...], b_ref[...],
                            preferred_element_type=jnp.float32)

    @pl.when(pl.program_id(2) == pl.num_programs(2) - 1)
    def _():
        o_ref[...] = acc_ref[...].astype(o_ref.dtype)


def pallas_matmul(a, b, *, out_dtype=jnp.float32, tm=512, tn=512, tk=256):
    """Tiled, pipelined matmul: bf16 MXU operands, f32 accumulation."""
    M, K = a.shape
    K2, N = b.shape
    assert K == K2
    a = a.astype(jnp.bfloat16)
    b = b.astype(jnp.bfloat16)
    tm, Mp = _tile_and_pad(M, tm)
    tn, Np = _tile_and_pad(N, tn)
    tk, Kp = _tile_and_pad(K, tk)
    if (Mp, Kp) != (M, K):
        a = jnp.pad(a, ((0, Mp - M), (0, Kp - K)))
    if (Kp, Np) != (K, N):
        b = jnp.pad(b, ((0, Kp - K), (0, Np - N)))
    out = pl.pallas_call(
        _matmul_kernel,
        out_shape=jax.ShapeDtypeStruct((Mp, Np), out_dtype),
        grid=(Mp // tm, Np // tn, Kp // tk),
        in_specs=[pl.BlockSpec((tm, tk), lambda i, j, k: (i, k)),
                  pl.BlockSpec((tk, tn), lambda i, j, k: (k, j))],
        out_specs=pl.BlockSpec((tm, tn), lambda i, j, k: (i, j)),
        scratch_shapes=[pltpu.VMEM((tm, tn), jnp.float32)],
        compiler_params=pltpu.CompilerParams(
            dimension_semantics=("parallel", "parallel", "arbitrary"),
            vmem_limit_bytes=_VMEM_LIMIT),
    )(a, b)
    return out[:M, :N] if (Mp, Np) != (M, N) else out


# ----------------------------- row L2-normalize --------------------------------

def _l2norm_kernel(x_ref, o_ref):
    x = x_ref[...]
    ssq = jnp.sum(x * x, axis=1, keepdims=True)
    # == x / max(||x||2, 1e-12)  (F.normalize semantics); rsqrt on the EUP
    o_ref[...] = x * jax.lax.rsqrt(jnp.maximum(ssq, 1e-24))


def pallas_l2_normalize(x, *, row_tile=512):
    N, D = x.shape
    tr, Np = _tile_and_pad(N, row_tile)
    xp = jnp.pad(x, ((0, Np - N), (0, 0))) if Np != N else x
    out = pl.pallas_call(
        _l2norm_kernel,
        out_shape=jax.ShapeDtypeStruct((Np, D), jnp.float32),
        grid=(Np // tr,),
        in_specs=[pl.BlockSpec((tr, D), lambda i: (i, 0))],
        out_specs=pl.BlockSpec((tr, D), lambda i: (i, 0)),
        compiler_params=pltpu.CompilerParams(
            dimension_semantics=("parallel",),
            vmem_limit_bytes=_VMEM_LIMIT),
    )(xp)
    return out[:N] if Np != N else out


# ----------------- GAT attention aggregation (sorted segment-sum) ---------------

def _gat_agg_kernel(ebs_ref, ebc_ref, dst_ref, ew_ref, out_ref, acc_ref,
                    *, feat_dim, node_tile, apply_elu):
    n = pl.program_id(1)
    e = pl.program_id(2)

    @pl.when(e == 0)
    def _():
        acc_ref[...] = jnp.zeros_like(acc_ref)

    # only process edge blocks that can contain edges of this node tile
    @pl.when(e < ebc_ref[n])
    def _():
        dst = dst_ref[...]                                            # (1, te) int32
        te = dst.shape[1]
        node_ids = (n * node_tile
                    + jax.lax.broadcasted_iota(jnp.int32, (node_tile, te), 0))
        onehot = (dst == node_ids).astype(jnp.bfloat16)               # exact in bf16
        # single fused MXU matmul: cols [0:feat_dim] -> weighted sum,
        # col feat_dim -> e_rowsum (edge_e column)
        acc_ref[...] += jnp.dot(onehot, ew_ref[...],
                                preferred_element_type=jnp.float32)

    @pl.when(e == pl.num_programs(2) - 1)
    def _():
        acc = acc_ref[...]
        rs = acc[:, feat_dim:feat_dim + 1]
        rs = jnp.where(rs == 0.0, 1e-12, rs)          # e_rowsum[e_rowsum==0]=1e-12
        h = acc[:, :feat_dim] / rs                    # EXACT divide (matches torch .div)
        if apply_elu:
            h = jnp.where(h > 0, h, jnp.exp(h) - 1.0)  # ELU
        out_ref[...] = h.astype(out_ref.dtype)


def pallas_gat_aggregate(edge_dst_sorted, edge_feat_sorted, num_nodes, feat_dim,
                         apply_elu, *, node_tile=_NODE_TILE, edge_tile=_EDGE_TILE):
    """Segment-sum GAT aggregation over dst-sorted edges.

    edge_dst_sorted : (E,) int32, nondecreasing aggregation index.
    edge_feat_sorted: (H, E, Dp) bf16; cols [0:feat_dim] = edge_e * edge_m,
                      col feat_dim = edge_e, remaining cols zero (lane-aligned).
    Returns (H, num_nodes, feat_dim) float32.
    """
    H, E, Dp = edge_feat_sorted.shape
    te, Ep = _tile_and_pad(E, edge_tile)
    tn, Np = _tile_and_pad(num_nodes, node_tile)
    n_ntiles = Np // tn
    n_eblocks = Ep // te

    # per-node-tile edge ranges on the sorted dst index
    tile_bounds = jnp.arange(n_ntiles + 1, dtype=jnp.int32) * tn
    bounds = jnp.searchsorted(edge_dst_sorted, tile_bounds, side='left').astype(jnp.int32)
    starts, ends = bounds[:-1], bounds[1:]
    eb_start = jnp.minimum(starts // te, n_eblocks - 1).astype(jnp.int32)
    eb_count = jnp.where(ends > starts,
                         (ends - 1) // te - starts // te + 1, 0).astype(jnp.int32)
    try:                       # eager: tight grid bound over edge blocks per node tile
        max_eb = max(int(jnp.max(eb_count)), 1)
    except Exception:          # under jit: static worst case; pl.when skips unused steps
        max_eb = n_eblocks

    if Ep != E:
        # padded edges: dst == Np never matches a node id -> contribute nothing
        edge_dst_sorted = jnp.pad(edge_dst_sorted, (0, Ep - E), constant_values=Np)
        edge_feat_sorted = jnp.pad(edge_feat_sorted, ((0, 0), (0, Ep - E), (0, 0)))
    dst2d = edge_dst_sorted[None, :].astype(jnp.int32)

    def _eb(n, e, ebs_ref, ebc_ref):
        # clamp to this node tile's valid edge-block range; repeated block index
        # on skipped steps avoids re-DMA
        return ebs_ref[n] + jnp.minimum(e, jnp.maximum(ebc_ref[n] - 1, 0))

    kernel = functools.partial(_gat_agg_kernel, feat_dim=feat_dim,
                               node_tile=tn, apply_elu=apply_elu)
    out = pl.pallas_call(
        kernel,
        out_shape=jax.ShapeDtypeStruct((H, Np, feat_dim), jnp.float32),
        grid_spec=pltpu.PrefetchScalarGridSpec(
            num_scalar_prefetch=2,
            grid=(H, n_ntiles, max_eb),
            in_specs=[
                pl.BlockSpec((1, te),
                             lambda h, n, e, ebs, ebc: (0, _eb(n, e, ebs, ebc))),
                pl.BlockSpec((None, te, Dp),
                             lambda h, n, e, ebs, ebc: (h, _eb(n, e, ebs, ebc), 0)),
            ],
            out_specs=pl.BlockSpec((None, tn, feat_dim),
                                   lambda h, n, e, ebs, ebc: (h, n, 0)),
            scratch_shapes=[pltpu.VMEM((tn, Dp), jnp.float32)],
        ),
        compiler_params=pltpu.CompilerParams(
            dimension_semantics=("parallel", "parallel", "arbitrary"),
            vmem_limit_bytes=_VMEM_LIMIT),
    )(eb_start, eb_count, dst2d, edge_feat_sorted)
    return out[:, :num_nodes, :] if Np != num_nodes else out


# ----------------------- masked combine + normalize ----------------------------

def _combine_norm_kernel(up_ref, gat_ref, mask_ref, o_ref):
    y = up_ref[...] + mask_ref[...] * gat_ref[...]
    ssq = jnp.sum(y * y, axis=1, keepdims=True)
    o_ref[...] = y * jax.lax.rsqrt(jnp.maximum(ssq, 1e-24))


def pallas_combine_normalize(upgraded, gat_out, mask, *, row_tile=512):
    N, D = upgraded.shape
    tr, Np = _tile_and_pad(N, row_tile)
    if Np != N:
        upgraded = jnp.pad(upgraded, ((0, Np - N), (0, 0)))
        gat_out = jnp.pad(gat_out, ((0, Np - N), (0, 0)))
        mask = jnp.pad(mask, ((0, Np - N), (0, 0)))
    out = pl.pallas_call(
        _combine_norm_kernel,
        out_shape=jax.ShapeDtypeStruct((Np, D), jnp.float32),
        grid=(Np // tr,),
        in_specs=[pl.BlockSpec((tr, D), lambda i: (i, 0)),
                  pl.BlockSpec((tr, D), lambda i: (i, 0)),
                  pl.BlockSpec((tr, 1), lambda i: (i, 0))],
        out_specs=pl.BlockSpec((tr, D), lambda i: (i, 0)),
        compiler_params=pltpu.CompilerParams(
            dimension_semantics=("parallel",),
            vmem_limit_bytes=_VMEM_LIMIT),
    )(upgraded, gat_out, mask)
    return out[:N] if Np != N else out


# ----------------------- per-edge feature construction --------------------------

def build_edge_features(proj0, proj1, projr, s0, s1, sr,
                        g0, g1, ga, gb, alpha, feat_pad):
    """Build the dst-sorted, weighted, rowsum-augmented edge tensor.

    proj*: (H, N|R+1, F) bf16 node/relation projections (relation table carries a
    trailing zero row so 1-hop and n-hop edges share one gather expression).
    s*:   (H, N|R+1) f32 folded attention-score contributions (a_2 folded into
    the projection weights -> per-edge score / exp computed once).
    Returns (H, E, feat_pad) bf16.
    """
    em = (proj0[:, g0].astype(jnp.float32) + proj1[:, g1].astype(jnp.float32)
          + projr[:, ga].astype(jnp.float32) + projr[:, gb].astype(jnp.float32))
    sc = s0[:, g0] + s1[:, g1] + sr[:, ga] + sr[:, gb]            # (H, E)
    edge_e = jnp.exp(-jnp.where(sc > 0, sc, alpha * sc))          # LeakyReLU + exp
    ew = edge_e[..., None] * em                                   # (H, E, F)
    H_, E_, F_ = ew.shape
    pad = feat_pad - F_ - 1
    parts = [ew.astype(jnp.bfloat16), edge_e[..., None].astype(jnp.bfloat16)]
    if pad > 0:
        parts.append(jnp.zeros((H_, E_, pad), jnp.bfloat16))
    return jnp.concatenate(parts, axis=-1)


# ----------------------------- Model (JAX) -------------------------------------

def _xavier_uniform(key, shape, gain=1.414):
    fan_in, fan_out = shape[0], shape[1]
    bound = gain * jnp.sqrt(6.0 / (fan_in + fan_out))
    return jax.random.uniform(key, shape, jnp.float32, -bound, bound)


def _xavier_normal(key, shape, gain=1.414):
    fan_in, fan_out = shape[-1], shape[-2]
    std = gain * jnp.sqrt(2.0 / (fan_in + fan_out))
    return std * jax.random.normal(key, shape, jnp.float32)


class SpKBGATModifiedPallas:
    def __init__(self, initial_entity_emb, initial_relation_emb, entity_out_dim,
                 relation_out_dim, drop_GAT, alpha, nheads_GAT, key):
        self.num_nodes, self.entity_in_dim = initial_entity_emb.shape
        self.num_relation, self.relation_dim = initial_relation_emb.shape
        self.entity_out_dim_1 = entity_out_dim[0]
        self.nheads_GAT_1 = nheads_GAT[0]
        self.alpha = float(alpha)
        self.drop_GAT = float(drop_GAT)
        # TODO(synk): stochastic nn.Dropout (train mode) not modeled; eval-mode equivalence only.

        self.entity_embeddings = jnp.asarray(initial_entity_emb, jnp.float32)
        self.relation_embeddings = jnp.asarray(initial_relation_emb, jnp.float32)

        nhid = self.entity_out_dim_1
        H = self.nheads_GAT_1
        ein = self.entity_in_dim
        rdim = self.relation_dim
        din1 = 2 * ein + rdim
        dout = H * nhid
        din2 = 2 * dout + dout
        self.nhid, self.H, self.dout = nhid, H, dout

        keys = jax.random.split(key, 8)

        # ----- layer-1 attention heads: torch a (nhid, din1), a_2 (1, nhid) per head -----
        a1 = _xavier_normal(keys[0], (H, nhid, din1))
        a1_t = jnp.transpose(a1, (0, 2, 1))                       # (H, din1, nhid)
        A1_e0 = a1_t[:, :ein, :]
        A1_e1 = a1_t[:, ein:2 * ein, :]
        A1_rel = a1_t[:, 2 * ein:, :]
        a1_2 = _xavier_normal(keys[1], (H, 1, nhid))
        # fold a_2 into the projections: per-edge score = s0[e0] + s1[e1] + sr[rel]
        V0 = jnp.einsum('hif,hf->ih', A1_e0, a1_2[:, 0, :])       # (ein, H)
        V1 = jnp.einsum('hif,hf->ih', A1_e1, a1_2[:, 0, :])
        VR = jnp.einsum('hif,hf->ih', A1_rel, a1_2[:, 0, :])      # (rdim, H)
        # batched, lane-dense layer-1 weights: ent / rel streamed exactly once each
        self.W1_ent = jnp.concatenate(
            [jnp.transpose(A1_e0, (1, 0, 2)).reshape(ein, H * nhid),
             jnp.transpose(A1_e1, (1, 0, 2)).reshape(ein, H * nhid),
             V0, V1], axis=1)                                     # (ein, 2*H*nhid + 2H)
        self.W1_rel_att = jnp.concatenate(
            [jnp.transpose(A1_rel, (1, 0, 2)).reshape(rdim, H * nhid), VR],
            axis=1)                                               # (rdim, H*nhid + H)

        # ----- SpGAT relation projection W -----
        self.W_rel = _xavier_uniform(keys[2], (rdim, dout))
        # ----- layer-2 out_att: torch a (dout, din2), a_2 (1, dout) -----
        a2 = _xavier_normal(keys[3], (1, dout, din2))
        a2_t = jnp.transpose(a2, (0, 2, 1))[0]                    # (din2, dout)
        A2_e0 = a2_t[:dout, :]
        A2_e1 = a2_t[dout:2 * dout, :]
        A2_rel = a2_t[2 * dout:, :]
        a2_2 = _xavier_normal(keys[4], (1, 1, dout))[0, 0]        # (dout,)
        U0 = A2_e0 @ a2_2[:, None]
        U1 = A2_e1 @ a2_2[:, None]
        UR = A2_rel @ a2_2[:, None]
        self.W2_x = jnp.concatenate([A2_e0, A2_e1, U0, U1], axis=1)   # (dout, 2*dout+2)
        self.W2_rel_att = jnp.concatenate([A2_rel, UR], axis=1)       # (dout, dout+1)

        self.W_entities = _xavier_uniform(keys[5], (ein, dout))

    def forward(self, adj, batch_inputs, train_indices_nhop):
        edge_list, edge_type = adj                                 # (2,E), (E,)
        N, R = self.num_nodes, self.num_relation
        H, nhid, dout = self.H, self.nhid, self.dout

        nh_dst = train_indices_nhop[:, 3]
        nh_src = train_indices_nhop[:, 0]
        nh_r0 = train_indices_nhop[:, 1]
        nh_r1 = train_indices_nhop[:, 2]

        # entity_embeddings.data = F.normalize(entity_embeddings, p=2, dim=1)
        ent = pallas_l2_normalize(self.entity_embeddings)
        rel = self.relation_embeddings
        # TODO(synk): normalized embeddings are not written back in-place (torch mutates .data).

        E1 = edge_list.shape[1]
        idx0 = jnp.concatenate([edge_list[0], nh_dst]).astype(jnp.int32)   # aggregation index
        idx1 = jnp.concatenate([edge_list[1], nh_src]).astype(jnp.int32)
        # relation index pairs; index R points at an appended zero row so 1-hop
        # (single relation) and n-hop (sum of two relations) edges share one expression
        rel_a = jnp.concatenate([edge_type.astype(jnp.int32), nh_r0.astype(jnp.int32)])
        rel_b = jnp.concatenate([jnp.full((E1,), R, jnp.int32), nh_r1.astype(jnp.int32)])
        E_tot = idx0.shape[0]

        # sort edges by destination ONCE; both attention layers reuse the order,
        # and pad the index arrays to the edge-tile multiple so the big edge
        # tensors are built already padded (no extra HBM pass).
        order = jnp.argsort(idx0)
        dst_s = idx0[order]
        idx1_s = idx1[order]
        rel_a_s = rel_a[order]
        rel_b_s = rel_b[order]
        _, Ep = _tile_and_pad(E_tot, _EDGE_TILE)
        pad = Ep - E_tot
        if pad:
            dst_kernel = jnp.pad(dst_s, (0, pad), constant_values=N)   # never matches a real row
            g0 = jnp.pad(dst_s, (0, pad))
            g1 = jnp.pad(idx1_s, (0, pad))
            ga = jnp.pad(rel_a_s, (0, pad), constant_values=R)
            gb = jnp.pad(rel_b_s, (0, pad), constant_values=R)
        else:
            dst_kernel, g0, g1, ga, gb = dst_s, dst_s, idx1_s, rel_a_s, rel_b_s

        # ---------------- layer 1: multi-head sparse attention ----------------
        d1p = _round_up(nhid + 1, 128)
        PB = pallas_matmul(ent, self.W1_ent, out_dtype=jnp.bfloat16)       # (N, 2*H*nhid+2H)
        QB = pallas_matmul(rel, self.W1_rel_att, out_dtype=jnp.bfloat16)   # (R, H*nhid+H)
        P0 = jnp.transpose(PB[:, :H * nhid].reshape(N, H, nhid), (1, 0, 2))
        P1 = jnp.transpose(PB[:, H * nhid:2 * H * nhid].reshape(N, H, nhid), (1, 0, 2))
        S0 = PB[:, 2 * H * nhid:2 * H * nhid + H].astype(jnp.float32).T    # (H, N)
        S1 = PB[:, 2 * H * nhid + H:].astype(jnp.float32).T
        PR = jnp.transpose(QB[:, :H * nhid].reshape(R, H, nhid), (1, 0, 2))
        SR = QB[:, H * nhid:].astype(jnp.float32).T                        # (H, R)
        PRz = jnp.concatenate([PR, jnp.zeros((H, 1, nhid), PR.dtype)], axis=1)
        SRz = jnp.concatenate([SR, jnp.zeros((H, 1), SR.dtype)], axis=1)

        edge_feat1 = build_edge_features(P0, P1, PRz, S0, S1, SRz,
                                         g0, g1, ga, gb, self.alpha, d1p)  # (H, Ep, d1p) bf16
        heads = pallas_gat_aggregate(dst_kernel, edge_feat1, N, nhid,
                                     apply_elu=True)                       # (H, N, nhid)
        x = jnp.transpose(heads, (1, 0, 2)).reshape(N, dout)               # concat over heads
        # dropout_layer(x): p == 0.0 -> identity

        out_relation_1 = pallas_matmul(rel, self.W_rel)                    # (R, dout) f32

        # ---------------- layer 2: out_att (single head) ----------------
        d2p = _round_up(dout + 1, 128)
        XB = pallas_matmul(x, self.W2_x, out_dtype=jnp.bfloat16)           # (N, 2*dout+2)
        RB = pallas_matmul(out_relation_1, self.W2_rel_att, out_dtype=jnp.bfloat16)
        Q0 = XB[:, :dout][None]                                            # (1, N, dout)
        Q1 = XB[:, dout:2 * dout][None]
        T0 = XB[:, 2 * dout:2 * dout + 1].astype(jnp.float32).T            # (1, N)
        T1 = XB[:, 2 * dout + 1:].astype(jnp.float32).T
        QR = RB[:, :dout][None]                                            # (1, R, dout)
        TR = RB[:, dout:].astype(jnp.float32).T                            # (1, R)
        QRz = jnp.concatenate([QR, jnp.zeros((1, 1, dout), QR.dtype)], axis=1)
        TRz = jnp.concatenate([TR, jnp.zeros((1, 1), TR.dtype)], axis=1)

        edge_feat2 = build_edge_features(Q0, Q1, QRz, T0, T1, TRz,
                                         g0, g1, ga, gb, self.alpha, d2p)  # (1, Ep, d2p)
        out_entity_1 = pallas_gat_aggregate(dst_kernel, edge_feat2, N, dout,
                                            apply_elu=True)[0]             # (N, dout)

        # ---------------- masked combine + L2-normalize ----------------
        mask = jnp.zeros((N, 1), jnp.float32).at[batch_inputs[:, 2], 0].set(1.0)
        entities_upgraded = pallas_matmul(ent, self.W_entities)            # (N, dout) f32
        out_entity_1 = pallas_combine_normalize(entities_upgraded, out_entity_1, mask)

        return out_entity_1, out_relation_1


# ----------------------------- driver -------------------------------------------

if __name__ == "__main__":
    key = jax.random.PRNGKey(0)
    k_ent, k_rel, k_edge, k_etype, k_nhop, k_batch, k_model = jax.random.split(key, 7)

    num_nodes = 32
    entity_in_dim = 16
    num_relation = 8
    relation_dim = 16
    entity_out_dim = [8, 16]
    relation_out_dim = [16]
    nheads_GAT = [2, 2]
    drop_GAT = 0.0
    alpha = 0.2
    n_edges = 24
    n_nhop = 8
    batch_size = 8

    initial_entity_emb = jax.random.normal(k_ent, (num_nodes, entity_in_dim), jnp.float32)
    initial_relation_emb = jax.random.normal(k_rel, (num_relation, relation_dim), jnp.float32)

    edge_list = jax.random.randint(k_edge, (2, n_edges), 0, num_nodes, jnp.int32)
    edge_type = jax.random.randint(k_etype, (n_edges,), 0, num_relation, jnp.int32)
    adj = (edge_list, edge_type)

    # columns: [src, rel1, rel2, dst]
    nh_nodes = jax.random.randint(k_nhop, (n_nhop, 2), 0, num_nodes, jnp.int32)
    nh_rels = jax.random.randint(jax.random.fold_in(k_nhop, 1), (n_nhop, 2), 0,
                                 num_relation, jnp.int32)
    train_indices_nhop = jnp.concatenate(
        [nh_nodes[:, :1], nh_rels, nh_nodes[:, 1:]], axis=1)               # (n_nhop, 4)

    batch_inputs = jax.random.randint(k_batch, (batch_size, 3), 0, num_nodes, jnp.int32)

    model = SpKBGATModifiedPallas(initial_entity_emb, initial_relation_emb,
                                  entity_out_dim, relation_out_dim, drop_GAT, alpha,
                                  nheads_GAT, k_model)

    out_entity_1, out_relation_1 = model.forward(adj, batch_inputs, train_indices_nhop)
    jax.block_until_ready((out_entity_1, out_relation_1))

    assert out_entity_1.shape == (num_nodes, entity_out_dim[0] * nheads_GAT[0])
    assert out_relation_1.shape == (num_relation, entity_out_dim[0] * nheads_GAT[0])
    assert bool(jnp.all(jnp.isfinite(out_entity_1))) and bool(jnp.all(jnp.isfinite(out_relation_1)))
    print("KERNEL_OK")
</pallas_src>

<mosaic_0001>
module attributes {stable_mosaic.version = 11 : i64} {
  func.func @_l2norm_kernel(%arg0: i32, %arg1: memref<32x16xf32, #tpu.memory_space<vmem>>, %arg2: memref<32x16xf32, #tpu.memory_space<vmem>>) attributes {dimension_semantics = [#tpu.dimension_semantics<parallel>], iteration_bounds = array<i64: 1>, scalar_prefetch = 0 : i64, scratch_operands = 0 : i64, tpu.core_type = #tpu.core_type<tc>, window_params = [{transform_indices = @transform_0, window_bounds = array<i64: 32, 16>}, {transform_indices = @transform_1, window_bounds = array<i64: 32, 16>}]} {
    %c0 = arith.constant 0 : index
    %c0_0 = arith.constant 0 : index
    %0 = vector.load %arg1[%c0, %c0_0] : memref<32x16xf32, #tpu.memory_space<vmem>>, vector<32x16xf32>
    %1 = arith.mulf %0, %0 : vector<32x16xf32>
    %cst = arith.constant dense<0.000000e+00> : vector<32xf32>
    %2 = vector.multi_reduction <add>, %1, %cst [1] : vector<32x16xf32> to vector<32xf32>
    %3 = vector.shape_cast %2 : vector<32xf32> to vector<32x1xf32>
    %cst_1 = arith.constant 1.000000e-24 : f32
    %4 = vector.broadcast %cst_1 : f32 to vector<32x1xf32>
    %5 = arith.maximumf %3, %4 : vector<32x1xf32>
    %6 = math.rsqrt %5 : vector<32x1xf32>
    %7 = vector.broadcast %6 : vector<32x1xf32> to vector<32x16xf32>
    %8 = arith.mulf %0, %7 : vector<32x16xf32>
    %c0_2 = arith.constant 0 : index
    %c0_3 = arith.constant 0 : index
    %9 = vector.load %arg2[%c0_2, %c0_3] : memref<32x16xf32, #tpu.memory_space<vmem>>, vector<32x16xf32>
    tpu.vector_store %arg2[%c0_2, %c0_3], %8 {strides = array<i32>} : memref<32x16xf32, #tpu.memory_space<vmem>>, vector<32x16xf32>,
    return
  }
  func.func @transform_0(%arg0: i32) -> (i32, i32) {
    %c0_i32 = arith.constant 0 : i32
    %c0_i32_0 = arith.constant 0 : i32
    return %arg0, %c0_i32 : i32, i32
  }
  func.func @transform_1(%arg0: i32) -> (i32, i32) {
    %c0_i32 = arith.constant 0 : i32
    %c0_i32_0 = arith.constant 0 : i32
    return %arg0, %c0_i32 : i32, i32
  }
}

</mosaic_0001>

<llo_original>
// kernel: tpu_custom_call.1
$region0: #{tpu_custom_call.1}
  #allocation0 [shape = 'u32[]', space=smem, size = 0x4, offset = 0x4, fixed_abs, tag = 'smem constant byte address 0x4 - core index']
  #allocation1 [shape = 'u32[144,128]{1,0:T(1,128)}', space=vmem, size = 0x12000, scoped, tag = 'internal scratch']
  %s0 = inlined_call_operand.vmem [shape: f32[32,16], index: 0, kind: input, shape index: {}]
  %s1 = inlined_call_operand.vmem [shape: f32[32,16], index: 1, kind: output, shape index: {}]
  %s2 = sld [smem:[#allocation0]]
  $region14: #{tpu_custom_call.1} parent=0
    _
  %s4 = ssub.s32 1, %s2
  %s5 = scalar_select 0, %s4, %s2
  // Predicated region
  $region2: #{tpu_custom_call.1} parent=0 // pred_check
    _
  $region3: #{tpu_custom_call.1} parent=0 // pred_check_branch
    %7 = sbr.rel (0) target = $region5
  $region4: #{tpu_custom_call.1} parent=0 // pred_region
    _
  $region5: #{tpu_custom_call.1} parent=0 // pred_fallthru
    _
  %v8 = vld [vmem:[%s0] sm:$0xff]
  %v9 = vld [vmem:[%s0 + $0x8] sm:$0xff]
  %v10 = vld [vmem:[%s0 + $0x10] sm:$0xff]
  %v11 = vld [vmem:[%s0 + $0x18] sm:$0xff]
  %v12 = vmul.f32 %v8, %v8
  %v13 = vmul.f32 %v9, %v9
  %v14 = vmul.f32 %v10, %v10
  %v15 = vmul.f32 %v11, %v11
  %vm16 = vcmask 130048
  %v17 = vsel %vm16, %v12, 0.0
  %18 = vadd.xlane.f32.xlu0 %v17
  %v19 = vpop.xlane.xlu0 %18
  %v20 = vsel %vm16, %v13, 0.0
  %21 = vadd.xlane.f32.xlu0 %v20
  %v22 = vpop.xlane.xlu0 %21
  %v23 = vsel %vm16, %v14, 0.0
  %24 = vadd.xlane.f32.xlu0 %v23
  %v25 = vpop.xlane.xlu0 %24
  %v26 = vsel %vm16, %v15, 0.0
  %27 = vadd.xlane.f32.xlu0 %v26
  %v28 = vpop.xlane.xlu0 %27
  %v29 = vmax.f32 %v19, 1e-24
  %v30 = vmax.f32 %v22, 1e-24
  %v31 = vmax.f32 %v25, 1e-24
  %v32 = vmax.f32 %v28, 1e-24
  %v33 = vrsqrt.pop %v29
  %v34 = vrsqrt.pop %v30
  %v35 = vrsqrt.pop %v31
  %v36 = vrsqrt.pop %v32
  %v37 = vmul.f32 %v8, %v33
  %v38 = vmul.f32 %v9, %v34
  %v39 = vmul.f32 %v10, %v35
  %v40 = vmul.f32 %v11, %v36
  %41 = vst.msk [vmem:[%s1] sm:$0xff] %vm16, %v37
  %42 = vst.msk [vmem:[%s1 + $0x8] sm:$0xff] %vm16, %v38
  %43 = vst.msk [vmem:[%s1 + $0x10] sm:$0xff] %vm16, %v39
  %44 = vst.msk [vmem:[%s1 + $0x18] sm:$0xff] %vm16, %v40
  // Predicated region
  $region6: #{tpu_custom_call.1} parent=0 // pred_check
    _
  $region7: #{tpu_custom_call.1} parent=0 // pred_check_branch
    %46 = sbr.rel (0) target = $region9
  $region8: #{tpu_custom_call.1} parent=0 // pred_region
    _
  $region9: #{tpu_custom_call.1} parent=0 // pred_fallthru
    _
  // Predicated region
  $region10: #{tpu_custom_call.1} parent=0 // pred_check
    _
  $region11: #{tpu_custom_call.1} parent=0 // pred_check_branch
    %48 = sbr.rel (0) target = $region13
  $region12: #{tpu_custom_call.1} parent=0 // pred_region
    _
  $region13: #{tpu_custom_call.1} parent=0 // pred_fallthru
    _

</llo_original>
